<compile_context>
chip_gen: v7x
topology: tpu7x:2x2x1
jax: 0.10.0
libtpu: 0.0.40
codegen_flags: <defaults>
</compile_context>

<pallas_src>
import jax
import jax.numpy as jnp
from jax.experimental import pallas as pl
from jax.experimental.pallas import tpu as pltpu

REPRESENTATION_COUNT = 512
NUM_CLASSES = 10
LANE = 128          # pad fc output 10 -> 128 for a lane-dense store
SUBLANE_BF16 = 16   # one bf16 vreg holds [16, 128]; pad batch rows to this


def regression_kernel(x_ref, w_embed_ref, w_fc_ref, b_fc_ref, out_ref, acc_ref):
    """One (m, k) grid step.

    x_ref:       [tm, tk]   bf16  flattened input tile
    w_embed_ref: [tk, 512]  bf16  stand-in learner projection, K-tiled
    w_fc_ref:    [512, 128] f32   fc weight (transposed, zero-padded 10->128)
    b_fc_ref:    [1, 128]   f32   fc bias (zero-padded 10->128)
    out_ref:     [tm, 128]  f32   padded logits
    acc_ref:     [tm, 512]  f32   embedding accumulator (lives across K steps)
    """
    k = pl.program_id(1)

    @pl.when(k == 0)
    def _():
        acc_ref[...] = jnp.zeros_like(acc_ref)

    # "learner(x, return_embedding=True)" stand-in, accumulated over K tiles.
    acc_ref[...] += jnp.dot(x_ref[...], w_embed_ref[...],
                            preferred_element_type=jnp.float32)

    @pl.when(k == pl.num_programs(1) - 1)
    def _():
        # embed.squeeze().squeeze() is a no-op (already [tm, 512]); then fc.
        logits = jnp.dot(acc_ref[...], w_fc_ref[...],
                         preferred_element_type=jnp.float32)
        out_ref[...] = (logits + b_fc_ref[...]).astype(out_ref.dtype)


def regression_net_forward(x_nchw, w_embed, w_fc_t, b_fc):
    B, C, H, W = x_nchw.shape
    feat = C * H * W
    assert w_embed.shape == (feat, REPRESENTATION_COUNT)

    # ---- glue (plain JAX): flatten, pad, cast --------------------------------
    x_flat = x_nchw.reshape(B, feat)

    # Pad feat to a lane multiple; padded rows/cols are zero so the matmul is
    # unchanged. Pad batch rows to a bf16-friendly multiple of 16.
    feat_pad = -(-feat // LANE) * LANE
    b_pad = max(SUBLANE_BF16, -(-B // SUBLANE_BF16) * SUBLANE_BF16)

    tm = SUBLANE_BF16
    for cand in (256, 128, 64, 32, 16):
        if b_pad % cand == 0:
            tm = cand
            break
    # With a real (larger) batch the M axis gets >1 tile and the "parallel"
    # semantics shard it across v7x's two TensorCores.

    # K tile: big enough to amortize the ~0.35us/step overhead, small enough
    # that the double-buffered bf16 tile (2 * tk * 512 * 2B) stays far under
    # scoped VMEM on every generation (v5e 16 MiB default .. v7x 64 MiB phys).
    tk = feat_pad
    for cand in (2048, 1024, 512, 256, 128):
        if feat_pad % cand == 0 and feat_pad // cand >= 2:
            tk = cand
            break

    x_pad = jnp.zeros((b_pad, feat_pad), jnp.bfloat16)
    x_pad = x_pad.at[:B, :feat].set(x_flat.astype(jnp.bfloat16))
    w_embed_pad = jnp.zeros((feat_pad, REPRESENTATION_COUNT), jnp.bfloat16)
    w_embed_pad = w_embed_pad.at[:feat, :].set(w_embed.astype(jnp.bfloat16))

    # fc params: transpose already done by caller; zero-pad 10 -> 128 lanes.
    w_fc_pad = jnp.zeros((REPRESENTATION_COUNT, LANE), jnp.float32)
    w_fc_pad = w_fc_pad.at[:, :NUM_CLASSES].set(w_fc_t.astype(jnp.float32))
    b_fc_pad = jnp.zeros((1, LANE), jnp.float32)
    b_fc_pad = b_fc_pad.at[:, :NUM_CLASSES].set(
        b_fc.reshape(1, NUM_CLASSES).astype(jnp.float32))

    flops = (2 * b_pad * feat_pad * REPRESENTATION_COUNT
             + 2 * b_pad * REPRESENTATION_COUNT * LANE)
    bytes_accessed = (x_pad.size * 2 + w_embed_pad.size * 2
                      + w_fc_pad.size * 4 + b_fc_pad.size * 4
                      + b_pad * LANE * 4)
    cost = pl.CostEstimate(flops=flops, transcendentals=0,
                           bytes_accessed=bytes_accessed)

    out_pad = pl.pallas_call(
        regression_kernel,
        out_shape=jax.ShapeDtypeStruct((b_pad, LANE), jnp.float32),
        grid_spec=pltpu.PrefetchScalarGridSpec(
            num_scalar_prefetch=0,
            grid=(b_pad // tm, feat_pad // tk),          # (M tiles, K tiles)
            in_specs=[
                pl.BlockSpec((tm, tk), lambda m, k: (m, k)),
                pl.BlockSpec((tk, REPRESENTATION_COUNT), lambda m, k: (k, 0)),
                pl.BlockSpec((REPRESENTATION_COUNT, LANE), lambda m, k: (0, 0)),
                pl.BlockSpec((1, LANE), lambda m, k: (0, 0)),
            ],
            out_specs=pl.BlockSpec((tm, LANE), lambda m, k: (m, 0)),
            scratch_shapes=[pltpu.VMEM((tm, REPRESENTATION_COUNT), jnp.float32)],
        ),
        compiler_params=pltpu.CompilerParams(
            dimension_semantics=("parallel", "arbitrary"),
            vmem_limit_bytes=32 * 1024 * 1024,
        ),
        cost_estimate=cost,
    )(x_pad, w_embed_pad, w_fc_pad, b_fc_pad)

    # Strip batch + lane padding.
    return out_pad[:B, :NUM_CLASSES]


if __name__ == "__main__":
    key = jax.random.PRNGKey(0)
    k_x, k_we, k_wf, k_bf = jax.random.split(key, 4)

    # Small shapes consistent with the forward: image batch -> 512-d embed -> 10 classes.
    B, C, H, W = 2, 4, 16, 16
    feat = C * H * W  # 1024 -> 2 K-tiles of 512, exercising the accumulator path.

    x = jax.random.normal(k_x, (B, C, H, W), dtype=jnp.float32)

    # Deterministic parameter init (synthetic; not a checkpoint load).
    w_embed = jax.random.normal(
        k_we, (feat, REPRESENTATION_COUNT), dtype=jnp.float32) * 0.02
    # torch fc weight is [num_classes, 512]; we store its transpose for the kernel.
    w_fc_t = jax.random.normal(
        k_wf, (REPRESENTATION_COUNT, NUM_CLASSES), dtype=jnp.float32) * 0.05
    b_fc = jax.random.normal(k_bf, (NUM_CLASSES,), dtype=jnp.float32) * 0.01

    out = regression_net_forward(x, w_embed, w_fc_t, b_fc)
    out = jax.block_until_ready(out)

    # Pure-JAX reference at the kernel's input precision (embed matmul consumes
    # bf16 operands with f32 accumulation; fc runs in f32).
    x_bf = x.reshape(B, feat).astype(jnp.bfloat16).astype(jnp.float32)
    w_bf = w_embed.astype(jnp.bfloat16).astype(jnp.float32)
    embed_ref = x_bf @ w_bf
    ref = embed_ref @ w_fc_t + b_fc

    assert out.shape == (B, NUM_CLASSES)
    assert jnp.allclose(out, ref, atol=1e-2, rtol=1e-2), float(
        jnp.max(jnp.abs(out - ref)))

    print("KERNEL_OK")
</pallas_src>

<mosaic_0001>
module attributes {stable_mosaic.version = 11 : i64} {
  func.func @regression_kernel(%arg0: i32, %arg1: i32, %arg2: memref<16x512xbf16, #tpu.memory_space<vmem>>, %arg3: memref<512x512xbf16, #tpu.memory_space<vmem>>, %arg4: memref<512x128xf32, #tpu.memory_space<vmem>>, %arg5: memref<1x128xf32, #tpu.memory_space<vmem>>, %arg6: memref<16x128xf32, #tpu.memory_space<vmem>>, %arg7: memref<16x512xf32, #tpu.memory_space<vmem>>) attributes {dimension_semantics = [#tpu.dimension_semantics<parallel>, #tpu.dimension_semantics<arbitrary>], iteration_bounds = array<i64: 1, 2>, scalar_prefetch = 0 : i64, scratch_operands = 1 : i64, tpu.core_type = #tpu.core_type<tc>, window_params = [{transform_indices = @transform_0, window_bounds = array<i64: 16, 512>}, {transform_indices = @transform_1, window_bounds = array<i64: 512, 512>}, {pipeline_mode = #tpu.pipeline_mode<synchronous>, transform_indices = @transform_2, window_bounds = array<i64: 512, 128>}, {pipeline_mode = #tpu.pipeline_mode<synchronous>, transform_indices = @transform_3, window_bounds = array<i64: 1, 128>}, {transform_indices = @transform_4, window_bounds = array<i64: 16, 128>}]} {
    %c0_i32 = arith.constant 0 : i32
    %0 = arith.cmpi eq, %arg1, %c0_i32 : i32
    %1 = arith.extui %0 : i1 to i32
    %c0_i32_0 = arith.constant 0 : i32
    %2 = arith.cmpi ne, %1, %c0_i32_0 : i32
    scf.if %2 {
      %cst_9 = arith.constant 0.000000e+00 : f32
      %12 = vector.broadcast %cst_9 : f32 to vector<16x512xf32>
      %c0_10 = arith.constant 0 : index
      %c0_11 = arith.constant 0 : index
      %13 = vector.load %arg7[%c0_10, %c0_11] : memref<16x512xf32, #tpu.memory_space<vmem>>, vector<16x512xf32>
      tpu.vector_store %arg7[%c0_10, %c0_11], %12 {strides = array<i32>} : memref<16x512xf32, #tpu.memory_space<vmem>>, vector<16x512xf32>,
    } else {
    }
    %c0 = arith.constant 0 : index
    %c0_1 = arith.constant 0 : index
    %3 = vector.load %arg7[%c0, %c0_1] : memref<16x512xf32, #tpu.memory_space<vmem>>, vector<16x512xf32>
    %c0_2 = arith.constant 0 : index
    %c0_3 = arith.constant 0 : index
    %4 = vector.load %arg2[%c0_2, %c0_3] : memref<16x512xbf16, #tpu.memory_space<vmem>>, vector<16x512xbf16>
    %c0_4 = arith.constant 0 : index
    %c0_5 = arith.constant 0 : index
    %5 = vector.load %arg3[%c0_4, %c0_5] : memref<512x512xbf16, #tpu.memory_space<vmem>>, vector<512x512xbf16>
    %cst = arith.constant dense<0.000000e+00> : vector<16x512xf32>
    %6 = tpu.matmul %4, %5, %cst {dimension_numbers = #tpu.dot_dimension_numbers<[1], [0], [0], [1], [0, 0, 1, 1], [], []>} : vector<16x512xbf16>, vector<512x512xbf16>, vector<16x512xf32> -> vector<16x512xf32>
    %7 = arith.addf %3, %6 : vector<16x512xf32>
    %c0_6 = arith.constant 0 : index
    %c0_7 = arith.constant 0 : index
    %8 = vector.load %arg7[%c0_6, %c0_7] : memref<16x512xf32, #tpu.memory_space<vmem>>, vector<16x512xf32>
    tpu.vector_store %arg7[%c0_6, %c0_7], %7 {strides = array<i32>} : memref<16x512xf32, #tpu.memory_space<vmem>>, vector<16x512xf32>,
    %c1_i32 = arith.constant 1 : i32
    %9 = arith.cmpi eq, %arg1, %c1_i32 : i32
    %10 = arith.extui %9 : i1 to i32
    %c0_i32_8 = arith.constant 0 : i32
    %11 = arith.cmpi ne, %10, %c0_i32_8 : i32
    scf.if %11 {
      %c0_9 = arith.constant 0 : index
      %c0_10 = arith.constant 0 : index
      %12 = vector.load %arg7[%c0_9, %c0_10] : memref<16x512xf32, #tpu.memory_space<vmem>>, vector<16x512xf32>
      %c0_11 = arith.constant 0 : index
      %c0_12 = arith.constant 0 : index
      %13 = vector.load %arg4[%c0_11, %c0_12] : memref<512x128xf32, #tpu.memory_space<vmem>>, vector<512x128xf32>
      %cst_13 = arith.constant dense<0.000000e+00> : vector<16x128xf32>
      %14 = tpu.matmul %12, %13, %cst_13 {dimension_numbers = #tpu.dot_dimension_numbers<[1], [0], [0], [1], [0, 0, 1, 1], [], []>} : vector<16x512xf32>, vector<512x128xf32>, vector<16x128xf32> -> vector<16x128xf32>
      %c0_14 = arith.constant 0 : index
      %c0_15 = arith.constant 0 : index
      %15 = vector.load %arg5[%c0_14, %c0_15] : memref<1x128xf32, #tpu.memory_space<vmem>>, vector<1x128xf32>
      %16 = vector.broadcast %15 : vector<1x128xf32> to vector<16x128xf32>
      %17 = arith.addf %14, %16 : vector<16x128xf32>
      %c0_16 = arith.constant 0 : index
      %c0_17 = arith.constant 0 : index
      %18 = vector.load %arg6[%c0_16, %c0_17] : memref<16x128xf32, #tpu.memory_space<vmem>>, vector<16x128xf32>
      tpu.vector_store %arg6[%c0_16, %c0_17], %17 {strides = array<i32>} : memref<16x128xf32, #tpu.memory_space<vmem>>, vector<16x128xf32>,
    } else {
    }
    return
  }
  func.func @transform_0(%arg0: i32, %arg1: i32) -> (i32, i32) {
    %c0_i32 = arith.constant 0 : i32
    return %arg0, %arg1 : i32, i32
  }
  func.func @transform_1(%arg0: i32, %arg1: i32) -> (i32, i32) {
    %c0_i32 = arith.constant 0 : i32
    %c0_i32_0 = arith.constant 0 : i32
    return %arg1, %c0_i32 : i32, i32
  }
  func.func @transform_2(%arg0: i32, %arg1: i32) -> (i32, i32) {
    %c0_i32 = arith.constant 0 : i32
    %c0_i32_0 = arith.constant 0 : i32
    %c0_i32_1 = arith.constant 0 : i32
    return %c0_i32, %c0_i32_0 : i32, i32
  }
  func.func @transform_3(%arg0: i32, %arg1: i32) -> (i32, i32) {
    %c0_i32 = arith.constant 0 : i32
    %c0_i32_0 = arith.constant 0 : i32
    %c0_i32_1 = arith.constant 0 : i32
    return %c0_i32, %c0_i32_0 : i32, i32
  }
  func.func @transform_4(%arg0: i32, %arg1: i32) -> (i32, i32) {
    %c0_i32 = arith.constant 0 : i32
    %c0_i32_0 = arith.constant 0 : i32
    return %arg0, %c0_i32 : i32, i32
  }
}

</mosaic_0001>

<llo_original>
// kernel: tpu_custom_call.1
$region0: #{tpu_custom_call.1}
  #allocation0 [shape = 'u32[]', space=smem, size = 0x4, offset = 0x4, fixed_abs, tag = 'smem constant byte address 0x4 - core index']
  #allocation1 [shape = 'u32[144,128]{1,0:T(1,128)}', space=vmem, size = 0x12000, scoped, tag = 'internal scratch']
  #allocation2 [shape = 'f32[16,512]{1,0:T(8,128)}', space=vmem, size = 0x8000, scoped, tag = 'scratch operand']
  %s0 = inlined_call_operand.hbm [shape: bf16[16,1024], index: 0, kind: input, shape index: {}]
  %s1 = inlined_call_operand.hbm [shape: bf16[1024,512], index: 1, kind: input, shape index: {}]
  %s2 = inlined_call_operand.hbm [shape: f32[512,128], index: 2, kind: input, shape index: {}]
  %s3 = inlined_call_operand.vmem [shape: f32[1,128], index: 3, kind: input, shape index: {}]
  %s4 = inlined_call_operand.hbm [shape: f32[16,128], index: 4, kind: output, shape index: {}]
  %s5 = sld [smem:[#allocation0]]
  $region69: #{tpu_custom_call.1} parent=0
    _
  %s7 = ssub.s32 1, %s5
  %s8 = scalar_select 0, %s7, %s5
  $region1: #{tpu_custom_call.1} parent=0
    #allocation3 [shape = 'u8[32768]{0}', space=vmem, size = 0x8000, scoped, tag = 'input window, operand 0']
    #allocation4 [shape = 's32[2]{0}', space=sflag, size = 0x8, scoped, tag = 'scoped memory for tpu_custom_call.1']
    #allocation5 [shape = 's32[2]{0}', space=sflag, size = 0x8, scoped, tag = 'scoped memory for tpu_custom_call.1']
    #allocation6 [shape = 'u8[1048576]{0}', space=vmem, size = 0x100000, scoped, tag = 'input window, operand 1']
    #allocation7 [shape = 's32[2]{0}', space=sflag, size = 0x8, scoped, tag = 'scoped memory for tpu_custom_call.1']
    #allocation8 [shape = 'u8[262144]{0}', space=vmem, size = 0x40000, scoped, tag = 'input window, operand 2, single buffered']
    #allocation9 [shape = 'u8[8192]{0}', space=vmem, size = 0x2000, scoped, tag = 'output window, operand 0, single buffered']
    %9 = vsyncpa [#allocation4], 0
    %s10 = scalar_lea.sflag [#allocation4], 1
    %11 = vsyncpa %s10, 0
    %12 = vsyncpa [#allocation7], 0
    %s13 = scalar_lea.sflag [#allocation7], 1
    %14 = vsyncpa %s13, 0
    %15 = vsyncpa [#allocation5], 0
    loop: start=0, step=1, limit=4
    $region2: #{tpu_custom_call.1} parent=1 // loop_pre_header
      _
    $region3: #{tpu_custom_call.1} parent=1 // loop_header
      %s17 = sphi 0, %s21
      %p18 = scmp.ge.s32.totalorder %s17, 4
      %s24 = sphi 0, %s36
      %s25 = sphi 0, %s32
      %s26 = sphi 0, %s24
      %s27 = sphi 0, %s25
      %s28 = sphi 0, %s26
      %s29 = sphi 0, %s27
      %s41 = sphi 0, %s43
      %s44 = sphi 0, %s41
      %s45 = sphi 0, %s44
      %s61 = sphi 0, %s45
      %s67 = sphi 0, %s69
      %s70 = sphi 0, %s67
      %s71 = sphi 0, %s70
      %s87 = sphi 0, %s71
      %s91 = sphi 0, %s91
      %s93 = sphi 0, %s91
      %s94 = sphi 0, %s93
      %s108 = sphi 0, %s94
      %s112 = sphi 0, %s112
      %s114 = sphi 0, %s112
      %s115 = sphi 0, %s114
      %s129 = sphi 0, %s115
      %s135 = sphi 0, %s137
      %s138 = sphi 0, %s135
      %s139 = sphi 0, %s138
      %s155 = sphi 0, %s139
    $region4: #{tpu_custom_call.1} parent=1 // loop_header_branch
      %20 = sbr.rel (%p18) target = $region8
    $region5: #{tpu_custom_call.1} parent=1 // loop_body
      %s22 = ssub.s32 %s17, 1
      %s23 = ssub.s32 %s17, 2
      %s30 = sadd.s32 1, %s25
      %p31 = scmp.ge.s32.totalorder %s30, 2
      %s32 = scalar_select %p31, 0, %s30
      %s33 = sadd.s32 1, %s24
      %s34 = scalar_select %p31, %s33, %s24
      %p35 = scmp.ge.s32.totalorder %s34, 1
      %s36 = scalar_select %p35, 0, %s34
      %s37 = ssub.s32 %s24, %s36
      %s38 = ssub.s32 %s25, %s32
      %s39 = sor.u32 %s37, %s38
      %p40 = scmp.eq.s32.totalorder %s39, 0
      %s42 = sadd.s32 %s41, 1
      %s43 = scalar_select %p40, %s41, %s42
      %p46 = pneg %p40
      %p47 = scmp.eq.s32.totalorder %s17, 1
      %p48 = por %p46, %p47
      %p49 = scmp.ne.s32.totalorder %s41, %s44
      %p50 = scmp.eq.s32.totalorder %s17, 0
      %p51 = por %p49, %p50
      %p52 = scmp.ne.s32.totalorder %s41, %s44
      %p53 = scmp.eq.s32.totalorder %s22, 1
      %p54 = por %p52, %p53
      %p55 = scmp.ne.s32.totalorder %s44, %s45
      %p56 = scmp.eq.s32.totalorder %s22, 0
      %p57 = por %p55, %p56
      %p58 = scmp.ne.s32.totalorder %s44, %s45
      %p59 = scmp.eq.s32.totalorder %s23, 1
      %p60 = por %p58, %p59
      %p62 = scmp.ne.s32.totalorder %s45, %s61
      %p63 = scmp.eq.s32.totalorder %s23, 0
      %p64 = por %p62, %p63
      %s65 = ssub.s32 %s25, %s32
      %p66 = scmp.eq.s32.totalorder %s65, 0
      %s68 = sadd.s32 %s67, 1
      %s69 = scalar_select %p66, %s67, %s68
      %p72 = pneg %p66
      %p73 = scmp.eq.s32.totalorder %s17, 1
      %p74 = por %p72, %p73
      %p75 = scmp.ne.s32.totalorder %s67, %s70
      %p76 = scmp.eq.s32.totalorder %s17, 0
      %p77 = por %p75, %p76
      %p78 = scmp.ne.s32.totalorder %s67, %s70
      %p79 = scmp.eq.s32.totalorder %s22, 1
      %p80 = por %p78, %p79
      %p81 = scmp.ne.s32.totalorder %s70, %s71
      %p82 = scmp.eq.s32.totalorder %s22, 0
      %p83 = por %p81, %p82
      %p84 = scmp.ne.s32.totalorder %s70, %s71
      %p85 = scmp.eq.s32.totalorder %s23, 1
      %p86 = por %p84, %p85
      %p88 = scmp.ne.s32.totalorder %s71, %s87
      %p89 = scmp.eq.s32.totalorder %s23, 0
      %p90 = por %p88, %p89
      %s92 = sadd.s32 %s91, 1
      %p95 = scmp.eq.s32.totalorder %s17, 1
      %p96 = scmp.ne.s32.totalorder %s91, %s93
      %p97 = scmp.eq.s32.totalorder %s17, 0
      %p98 = por %p96, %p97
      %p99 = scmp.ne.s32.totalorder %s91, %s93
      %p100 = scmp.eq.s32.totalorder %s22, 1
      %p101 = por %p99, %p100
      %p102 = scmp.ne.s32.totalorder %s93, %s94
      %p103 = scmp.eq.s32.totalorder %s22, 0
      %p104 = por %p102, %p103
      %p105 = scmp.ne.s32.totalorder %s93, %s94
      %p106 = scmp.eq.s32.totalorder %s23, 1
      %p107 = por %p105, %p106
      %p109 = scmp.ne.s32.totalorder %s94, %s108
      %p110 = scmp.eq.s32.totalorder %s23, 0
      %p111 = por %p109, %p110
      %s113 = sadd.s32 %s112, 1
      %p116 = scmp.eq.s32.totalorder %s17, 1
      %p117 = scmp.ne.s32.totalorder %s112, %s114
      %p118 = scmp.eq.s32.totalorder %s17, 0
      %p119 = por %p117, %p118
      %p120 = scmp.ne.s32.totalorder %s112, %s114
      %p121 = scmp.eq.s32.totalorder %s22, 1
      %p122 = por %p120, %p121
      %p123 = scmp.ne.s32.totalorder %s114, %s115
      %p124 = scmp.eq.s32.totalorder %s22, 0
      %p125 = por %p123, %p124
      %p126 = scmp.ne.s32.totalorder %s114, %s115
      %p127 = scmp.eq.s32.totalorder %s23, 1
      %p128 = por %p126, %p127
      %p130 = scmp.ne.s32.totalorder %s115, %s129
      %p131 = scmp.eq.s32.totalorder %s23, 0
      %p132 = por %p130, %p131
      %s133 = ssub.s32 %s24, %s36
      %p134 = scmp.eq.s32.totalorder %s133, 0
      %s136 = sadd.s32 %s135, 1
      %s137 = scalar_select %p134, %s135, %s136
      %p140 = pneg %p134
      %p141 = scmp.eq.s32.totalorder %s17, 1
      %p142 = por %p140, %p141
      %p143 = scmp.ne.s32.totalorder %s135, %s138
      %p144 = scmp.eq.s32.totalorder %s17, 0
      %p145 = por %p143, %p144
      %p146 = scmp.ne.s32.totalorder %s135, %s138
      %p147 = scmp.eq.s32.totalorder %s22, 1
      %p148 = por %p146, %p147
      %p149 = scmp.ne.s32.totalorder %s138, %s139
      %p150 = scmp.eq.s32.totalorder %s22, 0
      %p151 = por %p149, %p150
      %p152 = scmp.ne.s32.totalorder %s138, %s139
      %p153 = scmp.eq.s32.totalorder %s23, 1
      %p154 = por %p152, %p153
      %p156 = scmp.ne.s32.totalorder %s139, %s155
      %p157 = scmp.eq.s32.totalorder %s23, 0
      %p158 = por %p156, %p157
      %p159 = scmp.le.s32.totalorder 1, %s17
      %p160 = scmp.lt.s32.totalorder %s17, 3
      %p161 = pnand %p159, %p160
      %p162 = pneg %p161
      // Predicated region
      $region9: #{tpu_custom_call.1} parent=5 // pred_check
        _
      $region10: #{tpu_custom_call.1} parent=5 // pred_check_branch
        %164 = sbr.rel (%p161) target = $region12
      $region11: #{tpu_custom_call.1} parent=5 // pred_region
        %s165 = ssub.s32 %s17, 1
        // Predicated region
        $region13: #{tpu_custom_call.1} parent=11 // pred_check
          %p166 = pneg %p104
        $region14: #{tpu_custom_call.1} parent=11 // pred_check_branch
          %168 = sbr.rel (%p166) target = $region16
        $region15: #{tpu_custom_call.1} parent=11 // pred_region
          %s170 = ssub.s32 8192, 8192
          %171 = vsyncadd [#allocation7], %s170
          %s172 = sshll.u32 [#allocation8], 4
          %s173 = int_to_ptr.vmem [resolvable:$true] %s172
          %178 = dma.hbm_to_vmem [thread:$0]  %s2, 8192, %s173, [#allocation7], 128, 128, 8
        $region16: #{tpu_custom_call.1} parent=11 // pred_fallthru
          _
        // Predicated region
        $region17: #{tpu_custom_call.1} parent=11 // pred_check
          %p179 = pneg %p125
        $region18: #{tpu_custom_call.1} parent=11 // pred_check_branch
          %181 = sbr.rel (%p179) target = $region20
        $region19: #{tpu_custom_call.1} parent=11 // pred_region
          _
        $region20: #{tpu_custom_call.1} parent=11 // pred_fallthru
          _
      $region12: #{tpu_custom_call.1} parent=5 // pred_fallthru
        _
      %p182 = scmp.lt.s32.totalorder %s17, 2
      // Predicated region
      $region21: #{tpu_custom_call.1} parent=5 // pred_check
        %p183 = pneg %p182
      $region22: #{tpu_custom_call.1} parent=5 // pred_check_branch
        %185 = sbr.rel (%p183) target = $region24
      $region23: #{tpu_custom_call.1} parent=5 // pred_region
        // Predicated region
        $region25: #{tpu_custom_call.1} parent=23 // pred_check
          %p186 = pneg %p51
        $region26: #{tpu_custom_call.1} parent=23 // pred_check_branch
          %188 = sbr.rel (%p186) target = $region28
        $region27: #{tpu_custom_call.1} parent=23 // pred_region
          %s189 = sand.u32 %s41, 1
          %s190 = scalar_lea.sflag [#allocation4], %s189
          %s191 = sand.u32 %s41, 1
          %s192 = smul.addr %s191, 32
          %s193 = scalar_lea.vmem [#allocation3], %s192
          %s194 = smul.u32 2, %s24
          %s195 = smul.u32 4, %s25
          %s197 = ssub.s32 512, 512
          %198 = vsyncadd %s190, %s197
          %s199 = smul.addr %s194, 8
          %s200 = sadd.s32 %s195, %s199
          %s201 = smul.addr %s200, 64
          %s202 = scalar_lea.hbm %s0, %s201
          %s203 = sshll.u32 %s193, 4
          %s204 = int_to_ptr.vmem [resolvable:$true] %s203
          %209 = dma.hbm_to_vmem [thread:$0]  %s202, 512, %s204, %s190, 512, 256, 16
        $region28: #{tpu_custom_call.1} parent=23 // pred_fallthru
          _
        // Predicated region
        $region29: #{tpu_custom_call.1} parent=23 // pred_check
          %p210 = pneg %p77
        $region30: #{tpu_custom_call.1} parent=23 // pred_check_branch
          %212 = sbr.rel (%p210) target = $region32
        $region31: #{tpu_custom_call.1} parent=23 // pred_region
          %s213 = sand.u32 %s17, 1
          %s214 = scalar_lea.sflag [#allocation7], %s213
          %s215 = sand.u32 %s67, 1
          %s216 = smul.addr %s215, 1024
          %s217 = scalar_lea.vmem [#allocation6], %s216
          %s218 = smul.u32 64, %s25
          %s220 = ssub.s32 16384, 16384
          %221 = vsyncadd %s214, %s220
          %s222 = smul.addr %s218, 4
          %s223 = smul.addr %s222, 64
          %s224 = scalar_lea.hbm %s1, %s223
          %s225 = sshll.u32 %s217, 4
          %s226 = int_to_ptr.vmem [resolvable:$true] %s225
          %231 = dma.hbm_to_vmem [thread:$0]  %s224, 16384, %s226, %s214, 256, 256, 16
        $region32: #{tpu_custom_call.1} parent=23 // pred_fallthru
          _
      $region24: #{tpu_custom_call.1} parent=5 // pred_fallthru
        _
      %p232 = scmp.le.s32.totalorder 1, %s17
      %p233 = scmp.lt.s32.totalorder %s17, 3
      %p234 = pnand %p232, %p233
      %p235 = pneg %p234
      // Predicated region
      $region33: #{tpu_custom_call.1} parent=5 // pred_check
        _
      $region34: #{tpu_custom_call.1} parent=5 // pred_check_branch
        %237 = sbr.rel (%p234) target = $region36
      $region35: #{tpu_custom_call.1} parent=5 // pred_region
        %s238 = ssub.s32 %s17, 1
        %s239 = sand.u32 %s44, 1
        %s240 = scalar_lea.sflag [#allocation4], %s239
        %s241 = sand.u32 %s44, 1
        %s242 = smul.addr %s241, 32
        %s243 = scalar_lea.vmem [#allocation3], %s242
        // Predicated region
        $region37: #{tpu_custom_call.1} parent=35 // pred_check
          %p244 = pneg %p57
        $region38: #{tpu_custom_call.1} parent=35 // pred_check_branch
          %246 = sbr.rel (%p244) target = $region40
        $region39: #{tpu_custom_call.1} parent=35 // pred_region
          %247 = dma.done %s240, 512
        $region40: #{tpu_custom_call.1} parent=35 // pred_fallthru
          _
        %s248 = sand.u32 %s22, 1
        %s249 = scalar_lea.sflag [#allocation7], %s248
        %s250 = sand.u32 %s70, 1
        %s251 = smul.addr %s250, 1024
        %s252 = scalar_lea.vmem [#allocation6], %s251
        // Predicated region
        $region41: #{tpu_custom_call.1} parent=35 // pred_check
          %p253 = pneg %p83
        $region42: #{tpu_custom_call.1} parent=35 // pred_check_branch
          %255 = sbr.rel (%p253) target = $region44
        $region43: #{tpu_custom_call.1} parent=35 // pred_region
          %256 = dma.done %s249, 16384
        $region44: #{tpu_custom_call.1} parent=35 // pred_fallthru
          _
        // Predicated region
        $region45: #{tpu_custom_call.1} parent=35 // pred_check
          %p257 = pneg %p104
        $region46: #{tpu_custom_call.1} parent=35 // pred_check_branch
          %259 = sbr.rel (%p257) target = $region48
        $region47: #{tpu_custom_call.1} parent=35 // pred_region
          %260 = dma.done [#allocation7], 8192
        $region48: #{tpu_custom_call.1} parent=35 // pred_fallthru
          _
        %s261 = sand.u32 %s44, 1
        %s262 = scalar_lea.sflag [#allocation4], %s261
        %s263 = sand.u32 %s44, 1
        %s264 = smul.addr %s263, 32
        %s265 = scalar_lea.vmem [#allocation3], %s264
        %p266 = pneg %p57
        %p267 = pneg %p54
        %s268 = sand.u32 %s22, 1
        %s269 = scalar_lea.sflag [#allocation7], %s268
        %s270 = sand.u32 %s70, 1
        %s271 = smul.addr %s270, 1024
        %s272 = scalar_lea.vmem [#allocation6], %s271
        %p273 = pneg %p83
        %p274 = pneg %p80
        %p275 = pneg %p104
        %p276 = pneg %p101
        %p277 = pneg %p125
        %p278 = pneg %p122
        %p279 = pneg %p151
        %p280 = pneg %p148
        %s281 = smul.u32 2, %s26
        %s282 = smul.u32 4, %s27
        %s283 = smul.u32 64, %s27
        %s284 = smul.u32 2, %s26
        %p285 = scmp.eq.s32.totalorder %s27, 0
        // Predicated region
        $region49: #{tpu_custom_call.1} parent=35 // pred_check
          %p286 = pneg %p285
        $region50: #{tpu_custom_call.1} parent=35 // pred_check_branch
          %288 = sbr.rel (%p286) target = $region52
        $region51: #{tpu_custom_call.1} parent=35 // pred_region
          %289 = vst [vmem:[#allocation2] sm:$0xff] 0.0
          %290 = vst [vmem:[#allocation2 + $0x8] sm:$0xff] 0.0
          %291 = vst [vmem:[#allocation2 + $0x10] sm:$0xff] 0.0
          %292 = vst [vmem:[#allocation2 + $0x18] sm:$0xff] 0.0
          %293 = vst [vmem:[#allocation2 + $0x20] sm:$0xff] 0.0
          %294 = vst [vmem:[#allocation2 + $0x28] sm:$0xff] 0.0
          %295 = vst [vmem:[#allocation2 + $0x30] sm:$0xff] 0.0
          %296 = vst [vmem:[#allocation2 + $0x38] sm:$0xff] 0.0
        $region52: #{tpu_custom_call.1} parent=35 // pred_fallthru
          _
        %v297 = vld [vmem:[#allocation2] sm:$0xff]
        %v298 = vld [vmem:[#allocation2 + $0x8] sm:$0xff]
        %v299 = vld [vmem:[#allocation2 + $0x10] sm:$0xff]
        %v300 = vld [vmem:[#allocation2 + $0x18] sm:$0xff]
        %v301 = vld [vmem:[#allocation2 + $0x20] sm:$0xff]
        %v302 = vld [vmem:[#allocation2 + $0x28] sm:$0xff]
        %v303 = vld [vmem:[#allocation2 + $0x30] sm:$0xff]
        %v304 = vld [vmem:[#allocation2 + $0x38] sm:$0xff]
        %v305 = vld [vmem:[%s243] sm:$0xff]
        %v306 = vld [vmem:[%s243 + $0x8] sm:$0xff]
        %v307 = vld [vmem:[%s243 + $0x10] sm:$0xff]
        %v308 = vld [vmem:[%s243 + $0x18] sm:$0xff]
        %v309 = vld [vmem:[%s252] sm:$0xff]
        %v310 = vld [vmem:[%s252 + $0x8] sm:$0xff]
        %v311 = vld [vmem:[%s252 + $0x10] sm:$0xff]
        %v312 = vld [vmem:[%s252 + $0x18] sm:$0xff]
        %v313 = vld [vmem:[%s252 + $0x20] sm:$0xff]
        %v314 = vld [vmem:[%s252 + $0x28] sm:$0xff]
        %v315 = vld [vmem:[%s252 + $0x30] sm:$0xff]
        %v316 = vld [vmem:[%s252 + $0x38] sm:$0xff]
        %v317 = vld [vmem:[%s252 + $0x40] sm:$0xff]
        %v318 = vld [vmem:[%s252 + $0x48] sm:$0xff]
        %v319 = vld [vmem:[%s252 + $0x50] sm:$0xff]
        %v320 = vld [vmem:[%s252 + $0x58] sm:$0xff]
        %v321 = vld [vmem:[%s252 + $0x60] sm:$0xff]
        %v322 = vld [vmem:[%s252 + $0x68] sm:$0xff]
        %v323 = vld [vmem:[%s252 + $0x70] sm:$0xff]
        %v324 = vld [vmem:[%s252 + $0x78] sm:$0xff]
        %v325 = vld [vmem:[%s252 + $0x80] sm:$0xff]
        %v326 = vld [vmem:[%s252 + $0x88] sm:$0xff]
        %v327 = vld [vmem:[%s252 + $0x90] sm:$0xff]
        %v328 = vld [vmem:[%s252 + $0x98] sm:$0xff]
        %v329 = vld [vmem:[%s252 + $0xa0] sm:$0xff]
        %v330 = vld [vmem:[%s252 + $0xa8] sm:$0xff]
        %v331 = vld [vmem:[%s252 + $0xb0] sm:$0xff]
        %v332 = vld [vmem:[%s252 + $0xb8] sm:$0xff]
        %v333 = vld [vmem:[%s252 + $0xc0] sm:$0xff]
        %v334 = vld [vmem:[%s252 + $0xc8] sm:$0xff]
        %v335 = vld [vmem:[%s252 + $0xd0] sm:$0xff]
        %v336 = vld [vmem:[%s252 + $0xd8] sm:$0xff]
        %v337 = vld [vmem:[%s252 + $0xe0] sm:$0xff]
        %v338 = vld [vmem:[%s252 + $0xe8] sm:$0xff]
        %v339 = vld [vmem:[%s252 + $0xf0] sm:$0xff]
        %v340 = vld [vmem:[%s252 + $0xf8] sm:$0xff]
        %v341 = vld [vmem:[%s252 + $0x100] sm:$0xff]
        %v342 = vld [vmem:[%s252 + $0x108] sm:$0xff]
        %v343 = vld [vmem:[%s252 + $0x110] sm:$0xff]
        %v344 = vld [vmem:[%s252 + $0x118] sm:$0xff]
        %v345 = vld [vmem:[%s252 + $0x120] sm:$0xff]
        %v346 = vld [vmem:[%s252 + $0x128] sm:$0xff]
        %v347 = vld [vmem:[%s252 + $0x130] sm:$0xff]
        %v348 = vld [vmem:[%s252 + $0x138] sm:$0xff]
        %v349 = vld [vmem:[%s252 + $0x140] sm:$0xff]
        %v350 = vld [vmem:[%s252 + $0x148] sm:$0xff]
        %v351 = vld [vmem:[%s252 + $0x150] sm:$0xff]
        %v352 = vld [vmem:[%s252 + $0x158] sm:$0xff]
        %v353 = vld [vmem:[%s252 + $0x160] sm:$0xff]
        %v354 = vld [vmem:[%s252 + $0x168] sm:$0xff]
        %v355 = vld [vmem:[%s252 + $0x170] sm:$0xff]
        %v356 = vld [vmem:[%s252 + $0x178] sm:$0xff]
        %v357 = vld [vmem:[%s252 + $0x180] sm:$0xff]
        %v358 = vld [vmem:[%s252 + $0x188] sm:$0xff]
        %v359 = vld [vmem:[%s252 + $0x190] sm:$0xff]
        %v360 = vld [vmem:[%s252 + $0x198] sm:$0xff]
        %v361 = vld [vmem:[%s252 + $0x1a0] sm:$0xff]
        %v362 = vld [vmem:[%s252 + $0x1a8] sm:$0xff]
        %v363 = vld [vmem:[%s252 + $0x1b0] sm:$0xff]
        %v364 = vld [vmem:[%s252 + $0x1b8] sm:$0xff]
        %v365 = vld [vmem:[%s252 + $0x1c0] sm:$0xff]
        %v366 = vld [vmem:[%s252 + $0x1c8] sm:$0xff]
        %v367 = vld [vmem:[%s252 + $0x1d0] sm:$0xff]
        %v368 = vld [vmem:[%s252 + $0x1d8] sm:$0xff]
        %v369 = vld [vmem:[%s252 + $0x1e0] sm:$0xff]
        %v370 = vld [vmem:[%s252 + $0x1e8] sm:$0xff]
        %v371 = vld [vmem:[%s252 + $0x1f0] sm:$0xff]
        %v372 = vld [vmem:[%s252 + $0x1f8] sm:$0xff]
        %v373 = vld [vmem:[%s252 + $0x200] sm:$0xff]
        %v374 = vld [vmem:[%s252 + $0x208] sm:$0xff]
        %v375 = vld [vmem:[%s252 + $0x210] sm:$0xff]
        %v376 = vld [vmem:[%s252 + $0x218] sm:$0xff]
        %v377 = vld [vmem:[%s252 + $0x220] sm:$0xff]
        %v378 = vld [vmem:[%s252 + $0x228] sm:$0xff]
        %v379 = vld [vmem:[%s252 + $0x230] sm:$0xff]
        %v380 = vld [vmem:[%s252 + $0x238] sm:$0xff]
        %v381 = vld [vmem:[%s252 + $0x240] sm:$0xff]
        %v382 = vld [vmem:[%s252 + $0x248] sm:$0xff]
        %v383 = vld [vmem:[%s252 + $0x250] sm:$0xff]
        %v384 = vld [vmem:[%s252 + $0x258] sm:$0xff]
        %v385 = vld [vmem:[%s252 + $0x260] sm:$0xff]
        %v386 = vld [vmem:[%s252 + $0x268] sm:$0xff]
        %v387 = vld [vmem:[%s252 + $0x270] sm:$0xff]
        %v388 = vld [vmem:[%s252 + $0x278] sm:$0xff]
        %v389 = vld [vmem:[%s252 + $0x280] sm:$0xff]
        %v390 = vld [vmem:[%s252 + $0x288] sm:$0xff]
        %v391 = vld [vmem:[%s252 + $0x290] sm:$0xff]
        %v392 = vld [vmem:[%s252 + $0x298] sm:$0xff]
        %v393 = vld [vmem:[%s252 + $0x2a0] sm:$0xff]
        %v394 = vld [vmem:[%s252 + $0x2a8] sm:$0xff]
        %v395 = vld [vmem:[%s252 + $0x2b0] sm:$0xff]
        %v396 = vld [vmem:[%s252 + $0x2b8] sm:$0xff]
        %v397 = vld [vmem:[%s252 + $0x2c0] sm:$0xff]
        %v398 = vld [vmem:[%s252 + $0x2c8] sm:$0xff]
        %v399 = vld [vmem:[%s252 + $0x2d0] sm:$0xff]
        %v400 = vld [vmem:[%s252 + $0x2d8] sm:$0xff]
        %v401 = vld [vmem:[%s252 + $0x2e0] sm:$0xff]
        %v402 = vld [vmem:[%s252 + $0x2e8] sm:$0xff]
        %v403 = vld [vmem:[%s252 + $0x2f0] sm:$0xff]
        %v404 = vld [vmem:[%s252 + $0x2f8] sm:$0xff]
        %v405 = vld [vmem:[%s252 + $0x300] sm:$0xff]
        %v406 = vld [vmem:[%s252 + $0x308] sm:$0xff]
        %v407 = vld [vmem:[%s252 + $0x310] sm:$0xff]
        %v408 = vld [vmem:[%s252 + $0x318] sm:$0xff]
        %v409 = vld [vmem:[%s252 + $0x320] sm:$0xff]
        %v410 = vld [vmem:[%s252 + $0x328] sm:$0xff]
        %v411 = vld [vmem:[%s252 + $0x330] sm:$0xff]
        %v412 = vld [vmem:[%s252 + $0x338] sm:$0xff]
        %v413 = vld [vmem:[%s252 + $0x340] sm:$0xff]
        %v414 = vld [vmem:[%s252 + $0x348] sm:$0xff]
        %v415 = vld [vmem:[%s252 + $0x350] sm:$0xff]
        %v416 = vld [vmem:[%s252 + $0x358] sm:$0xff]
        %v417 = vld [vmem:[%s252 + $0x360] sm:$0xff]
        %v418 = vld [vmem:[%s252 + $0x368] sm:$0xff]
        %v419 = vld [vmem:[%s252 + $0x370] sm:$0xff]
        %v420 = vld [vmem:[%s252 + $0x378] sm:$0xff]
        %v421 = vld [vmem:[%s252 + $0x380] sm:$0xff]
        %v422 = vld [vmem:[%s252 + $0x388] sm:$0xff]
        %v423 = vld [vmem:[%s252 + $0x390] sm:$0xff]
        %v424 = vld [vmem:[%s252 + $0x398] sm:$0xff]
        %v425 = vld [vmem:[%s252 + $0x3a0] sm:$0xff]
        %v426 = vld [vmem:[%s252 + $0x3a8] sm:$0xff]
        %v427 = vld [vmem:[%s252 + $0x3b0] sm:$0xff]
        %v428 = vld [vmem:[%s252 + $0x3b8] sm:$0xff]
        %v429 = vld [vmem:[%s252 + $0x3c0] sm:$0xff]
        %v430 = vld [vmem:[%s252 + $0x3c8] sm:$0xff]
        %v431 = vld [vmem:[%s252 + $0x3d0] sm:$0xff]
        %v432 = vld [vmem:[%s252 + $0x3d8] sm:$0xff]
        %v433 = vld [vmem:[%s252 + $0x3e0] sm:$0xff]
        %v434 = vld [vmem:[%s252 + $0x3e8] sm:$0xff]
        %v435 = vld [vmem:[%s252 + $0x3f0] sm:$0xff]
        %v436 = vld [vmem:[%s252 + $0x3f8] sm:$0xff]
        %v441 = vunpack.c.l.b16 %v305
        %v442 = vunpack.c.h.b16 %v305
        %v443 = vunpack.c.l.b16 %v306
        %v444 = vunpack.c.h.b16 %v306
        %v445 = vunpack.c.l.b16 %v307
        %v446 = vunpack.c.h.b16 %v307
        %v447 = vunpack.c.l.b16 %v308
        %v448 = vunpack.c.h.b16 %v308
        %v449 = vpack.c.b16 %v445, %v441
        %v450 = vpack.c.b16 %v446, %v442
        %v451 = vpack.c.b16 %v447, %v443
        %v452 = vpack.c.b16 %v448, %v444
        %v585 = vunpack.c.l.b16 %v309
        %v586 = vunpack.c.h.b16 %v309
        %v587 = vunpack.c.l.b16 %v310
        %v588 = vunpack.c.h.b16 %v310
        %v589 = vunpack.c.l.b16 %v311
        %v590 = vunpack.c.h.b16 %v311
        %v591 = vunpack.c.l.b16 %v312
        %v592 = vunpack.c.h.b16 %v312
        %v593 = vunpack.c.l.b16 %v313
        %v594 = vunpack.c.h.b16 %v313
        %v595 = vunpack.c.l.b16 %v314
        %v596 = vunpack.c.h.b16 %v314
        %v597 = vunpack.c.l.b16 %v315
        %v598 = vunpack.c.h.b16 %v315
        %v599 = vunpack.c.l.b16 %v316
        %v600 = vunpack.c.h.b16 %v316
        %v601 = vunpack.c.l.b16 %v317
        %v602 = vunpack.c.h.b16 %v317
        %v603 = vunpack.c.l.b16 %v318
        %v604 = vunpack.c.h.b16 %v318
        %v605 = vunpack.c.l.b16 %v319
        %v606 = vunpack.c.h.b16 %v319
        %v607 = vunpack.c.l.b16 %v320
        %v608 = vunpack.c.h.b16 %v320
        %v609 = vunpack.c.l.b16 %v321
        %v610 = vunpack.c.h.b16 %v321
        %v611 = vunpack.c.l.b16 %v322
        %v612 = vunpack.c.h.b16 %v322
        %v613 = vunpack.c.l.b16 %v323
        %v614 = vunpack.c.h.b16 %v323
        %v615 = vunpack.c.l.b16 %v324
        %v616 = vunpack.c.h.b16 %v324
        %v617 = vunpack.c.l.b16 %v325
        %v618 = vunpack.c.h.b16 %v325
        %v619 = vunpack.c.l.b16 %v326
        %v620 = vunpack.c.h.b16 %v326
        %v621 = vunpack.c.l.b16 %v327
        %v622 = vunpack.c.h.b16 %v327
        %v623 = vunpack.c.l.b16 %v328
        %v624 = vunpack.c.h.b16 %v328
        %v625 = vunpack.c.l.b16 %v329
        %v626 = vunpack.c.h.b16 %v329
        %v627 = vunpack.c.l.b16 %v330
        %v628 = vunpack.c.h.b16 %v330
        %v629 = vunpack.c.l.b16 %v331
        %v630 = vunpack.c.h.b16 %v331
        %v631 = vunpack.c.l.b16 %v332
        %v632 = vunpack.c.h.b16 %v332
        %v633 = vunpack.c.l.b16 %v333
        %v634 = vunpack.c.h.b16 %v333
        %v635 = vunpack.c.l.b16 %v334
        %v636 = vunpack.c.h.b16 %v334
        %v637 = vunpack.c.l.b16 %v335
        %v638 = vunpack.c.h.b16 %v335
        %v639 = vunpack.c.l.b16 %v336
        %v640 = vunpack.c.h.b16 %v336
        %v641 = vunpack.c.l.b16 %v337
        %v642 = vunpack.c.h.b16 %v337
        %v643 = vunpack.c.l.b16 %v338
        %v644 = vunpack.c.h.b16 %v338
        %v645 = vunpack.c.l.b16 %v339
        %v646 = vunpack.c.h.b16 %v339
        %v647 = vunpack.c.l.b16 %v340
        %v648 = vunpack.c.h.b16 %v340
        %v649 = vunpack.c.l.b16 %v341
        %v650 = vunpack.c.h.b16 %v341
        %v651 = vunpack.c.l.b16 %v342
        %v652 = vunpack.c.h.b16 %v342
        %v653 = vunpack.c.l.b16 %v343
        %v654 = vunpack.c.h.b16 %v343
        %v655 = vunpack.c.l.b16 %v344
        %v656 = vunpack.c.h.b16 %v344
        %v657 = vunpack.c.l.b16 %v345
        %v658 = vunpack.c.h.b16 %v345
        %v659 = vunpack.c.l.b16 %v346
        %v660 = vunpack.c.h.b16 %v346
        %v661 = vunpack.c.l.b16 %v347
        %v662 = vunpack.c.h.b16 %v347
        %v663 = vunpack.c.l.b16 %v348
        %v664 = vunpack.c.h.b16 %v348
        %v665 = vunpack.c.l.b16 %v349
        %v666 = vunpack.c.h.b16 %v349
        %v667 = vunpack.c.l.b16 %v350
        %v668 = vunpack.c.h.b16 %v350
        %v669 = vunpack.c.l.b16 %v351
        %v670 = vunpack.c.h.b16 %v351
        %v671 = vunpack.c.l.b16 %v352
        %v672 = vunpack.c.h.b16 %v352
        %v673 = vunpack.c.l.b16 %v353
        %v674 = vunpack.c.h.b16 %v353
        %v675 = vunpack.c.l.b16 %v354
        %v676 = vunpack.c.h.b16 %v354
        %v677 = vunpack.c.l.b16 %v355
        %v678 = vunpack.c.h.b16 %v355
        %v679 = vunpack.c.l.b16 %v356
        %v680 = vunpack.c.h.b16 %v356
        %v681 = vunpack.c.l.b16 %v357
        %v682 = vunpack.c.h.b16 %v357
        %v683 = vunpack.c.l.b16 %v358
        %v684 = vunpack.c.h.b16 %v358
        %v685 = vunpack.c.l.b16 %v359
        %v686 = vunpack.c.h.b16 %v359
        %v687 = vunpack.c.l.b16 %v360
        %v688 = vunpack.c.h.b16 %v360
        %v689 = vunpack.c.l.b16 %v361
        %v690 = vunpack.c.h.b16 %v361
        %v691 = vunpack.c.l.b16 %v362
        %v692 = vunpack.c.h.b16 %v362
        %v693 = vunpack.c.l.b16 %v363
        %v694 = vunpack.c.h.b16 %v363
        %v695 = vunpack.c.l.b16 %v364
        %v696 = vunpack.c.h.b16 %v364
        %v697 = vunpack.c.l.b16 %v365
        %v698 = vunpack.c.h.b16 %v365
        %v699 = vunpack.c.l.b16 %v366
        %v700 = vunpack.c.h.b16 %v366
        %v701 = vunpack.c.l.b16 %v367
        %v702 = vunpack.c.h.b16 %v367
        %v703 = vunpack.c.l.b16 %v368
        %v704 = vunpack.c.h.b16 %v368
        %v705 = vunpack.c.l.b16 %v369
        %v706 = vunpack.c.h.b16 %v369
        %v707 = vunpack.c.l.b16 %v370
        %v708 = vunpack.c.h.b16 %v370
        %v709 = vunpack.c.l.b16 %v371
        %v710 = vunpack.c.h.b16 %v371
        %v711 = vunpack.c.l.b16 %v372
        %v712 = vunpack.c.h.b16 %v372
        %v713 = vunpack.c.l.b16 %v373
        %v714 = vunpack.c.h.b16 %v373
        %v715 = vunpack.c.l.b16 %v374
        %v716 = vunpack.c.h.b16 %v374
        %v717 = vunpack.c.l.b16 %v375
        %v718 = vunpack.c.h.b16 %v375
        %v719 = vunpack.c.l.b16 %v376
        %v720 = vunpack.c.h.b16 %v376
        %v721 = vunpack.c.l.b16 %v377
        %v722 = vunpack.c.h.b16 %v377
        %v723 = vunpack.c.l.b16 %v378
        %v724 = vunpack.c.h.b16 %v378
        %v725 = vunpack.c.l.b16 %v379
        %v726 = vunpack.c.h.b16 %v379
        %v727 = vunpack.c.l.b16 %v380
        %v728 = vunpack.c.h.b16 %v380
        %v729 = vunpack.c.l.b16 %v381
        %v730 = vunpack.c.h.b16 %v381
        %v731 = vunpack.c.l.b16 %v382
        %v732 = vunpack.c.h.b16 %v382
        %v733 = vunpack.c.l.b16 %v383
        %v734 = vunpack.c.h.b16 %v383
        %v735 = vunpack.c.l.b16 %v384
        %v736 = vunpack.c.h.b16 %v384
        %v737 = vunpack.c.l.b16 %v385
        %v738 = vunpack.c.h.b16 %v385
        %v739 = vunpack.c.l.b16 %v386
        %v740 = vunpack.c.h.b16 %v386
        %v741 = vunpack.c.l.b16 %v387
        %v742 = vunpack.c.h.b16 %v387
        %v743 = vunpack.c.l.b16 %v388
        %v744 = vunpack.c.h.b16 %v388
        %v745 = vunpack.c.l.b16 %v389
        %v746 = vunpack.c.h.b16 %v389
        %v747 = vunpack.c.l.b16 %v390
        %v748 = vunpack.c.h.b16 %v390
        %v749 = vunpack.c.l.b16 %v391
        %v750 = vunpack.c.h.b16 %v391
        %v751 = vunpack.c.l.b16 %v392
        %v752 = vunpack.c.h.b16 %v392
        %v753 = vunpack.c.l.b16 %v393
        %v754 = vunpack.c.h.b16 %v393
        %v755 = vunpack.c.l.b16 %v394
        %v756 = vunpack.c.h.b16 %v394
        %v757 = vunpack.c.l.b16 %v395
        %v758 = vunpack.c.h.b16 %v395
        %v759 = vunpack.c.l.b16 %v396
        %v760 = vunpack.c.h.b16 %v396
        %v761 = vunpack.c.l.b16 %v397
        %v762 = vunpack.c.h.b16 %v397
        %v763 = vunpack.c.l.b16 %v398
        %v764 = vunpack.c.h.b16 %v398
        %v765 = vunpack.c.l.b16 %v399
        %v766 = vunpack.c.h.b16 %v399
        %v767 = vunpack.c.l.b16 %v400
        %v768 = vunpack.c.h.b16 %v400
        %v769 = vunpack.c.l.b16 %v401
        %v770 = vunpack.c.h.b16 %v401
        %v771 = vunpack.c.l.b16 %v402
        %v772 = vunpack.c.h.b16 %v402
        %v773 = vunpack.c.l.b16 %v403
        %v774 = vunpack.c.h.b16 %v403
        %v775 = vunpack.c.l.b16 %v404
        %v776 = vunpack.c.h.b16 %v404
        %v777 = vunpack.c.l.b16 %v405
        %v778 = vunpack.c.h.b16 %v405
        %v779 = vunpack.c.l.b16 %v406
        %v780 = vunpack.c.h.b16 %v406
        %v781 = vunpack.c.l.b16 %v407
        %v782 = vunpack.c.h.b16 %v407
        %v783 = vunpack.c.l.b16 %v408
        %v784 = vunpack.c.h.b16 %v408
        %v785 = vunpack.c.l.b16 %v409
        %v786 = vunpack.c.h.b16 %v409
        %v787 = vunpack.c.l.b16 %v410
        %v788 = vunpack.c.h.b16 %v410
        %v789 = vunpack.c.l.b16 %v411
        %v790 = vunpack.c.h.b16 %v411
        %v791 = vunpack.c.l.b16 %v412
        %v792 = vunpack.c.h.b16 %v412
        %v793 = vunpack.c.l.b16 %v413
        %v794 = vunpack.c.h.b16 %v413
        %v795 = vunpack.c.l.b16 %v414
        %v796 = vunpack.c.h.b16 %v414
        %v797 = vunpack.c.l.b16 %v415
        %v798 = vunpack.c.h.b16 %v415
        %v799 = vunpack.c.l.b16 %v416
        %v800 = vunpack.c.h.b16 %v416
        %v801 = vunpack.c.l.b16 %v417
        %v802 = vunpack.c.h.b16 %v417
        %v803 = vunpack.c.l.b16 %v418
        %v804 = vunpack.c.h.b16 %v418
        %v805 = vunpack.c.l.b16 %v419
        %v806 = vunpack.c.h.b16 %v419
        %v807 = vunpack.c.l.b16 %v420
        %v808 = vunpack.c.h.b16 %v420
        %v809 = vunpack.c.l.b16 %v421
        %v810 = vunpack.c.h.b16 %v421
        %v811 = vunpack.c.l.b16 %v422
        %v812 = vunpack.c.h.b16 %v422
        %v813 = vunpack.c.l.b16 %v423
        %v814 = vunpack.c.h.b16 %v423
        %v815 = vunpack.c.l.b16 %v424
        %v816 = vunpack.c.h.b16 %v424
        %v817 = vunpack.c.l.b16 %v425
        %v818 = vunpack.c.h.b16 %v425
        %v819 = vunpack.c.l.b16 %v426
        %v820 = vunpack.c.h.b16 %v426
        %v821 = vunpack.c.l.b16 %v427
        %v822 = vunpack.c.h.b16 %v427
        %v823 = vunpack.c.l.b16 %v428
        %v824 = vunpack.c.h.b16 %v428
        %v825 = vunpack.c.l.b16 %v429
        %v826 = vunpack.c.h.b16 %v429
        %v827 = vunpack.c.l.b16 %v430
        %v828 = vunpack.c.h.b16 %v430
        %v829 = vunpack.c.l.b16 %v431
        %v830 = vunpack.c.h.b16 %v431
        %v831 = vunpack.c.l.b16 %v432
        %v832 = vunpack.c.h.b16 %v432
        %v833 = vunpack.c.l.b16 %v433
        %v834 = vunpack.c.h.b16 %v433
        %v835 = vunpack.c.l.b16 %v434
        %v836 = vunpack.c.h.b16 %v434
        %v837 = vunpack.c.l.b16 %v435
        %v838 = vunpack.c.h.b16 %v435
        %v839 = vunpack.c.l.b16 %v436
        %v840 = vunpack.c.h.b16 %v436
        %v841 = vpack.c.b16 %v589, %v585
        %v842 = vpack.c.b16 %v590, %v586
        %v843 = vpack.c.b16 %v591, %v587
        %v844 = vpack.c.b16 %v592, %v588
        %v845 = vpack.c.b16 %v597, %v593
        %v846 = vpack.c.b16 %v598, %v594
        %v847 = vpack.c.b16 %v599, %v595
        %v848 = vpack.c.b16 %v600, %v596
        %v849 = vpack.c.b16 %v605, %v601
        %v850 = vpack.c.b16 %v606, %v602
        %v851 = vpack.c.b16 %v607, %v603
        %v852 = vpack.c.b16 %v608, %v604
        %v853 = vpack.c.b16 %v613, %v609
        %v854 = vpack.c.b16 %v614, %v610
        %v855 = vpack.c.b16 %v615, %v611
        %v856 = vpack.c.b16 %v616, %v612
        %v857 = vpack.c.b16 %v621, %v617
        %v858 = vpack.c.b16 %v622, %v618
        %v859 = vpack.c.b16 %v623, %v619
        %v860 = vpack.c.b16 %v624, %v620
        %v861 = vpack.c.b16 %v629, %v625
        %v862 = vpack.c.b16 %v630, %v626
        %v863 = vpack.c.b16 %v631, %v627
        %v864 = vpack.c.b16 %v632, %v628
        %v865 = vpack.c.b16 %v637, %v633
        %v866 = vpack.c.b16 %v638, %v634
        %v867 = vpack.c.b16 %v639, %v635
        %v868 = vpack.c.b16 %v640, %v636
        %v869 = vpack.c.b16 %v645, %v641
        %v870 = vpack.c.b16 %v646, %v642
        %v871 = vpack.c.b16 %v647, %v643
        %v872 = vpack.c.b16 %v648, %v644
        %v873 = vpack.c.b16 %v653, %v649
        %v874 = vpack.c.b16 %v654, %v650
        %v875 = vpack.c.b16 %v655, %v651
        %v876 = vpack.c.b16 %v656, %v652
        %v877 = vpack.c.b16 %v661, %v657
        %v878 = vpack.c.b16 %v662, %v658
        %v879 = vpack.c.b16 %v663, %v659
        %v880 = vpack.c.b16 %v664, %v660
        %v881 = vpack.c.b16 %v669, %v665
        %v882 = vpack.c.b16 %v670, %v666
        %v883 = vpack.c.b16 %v671, %v667
        %v884 = vpack.c.b16 %v672, %v668
        %v885 = vpack.c.b16 %v677, %v673
        %v886 = vpack.c.b16 %v678, %v674
        %v887 = vpack.c.b16 %v679, %v675
        %v888 = vpack.c.b16 %v680, %v676
        %v889 = vpack.c.b16 %v685, %v681
        %v890 = vpack.c.b16 %v686, %v682
        %v891 = vpack.c.b16 %v687, %v683
        %v892 = vpack.c.b16 %v688, %v684
        %v893 = vpack.c.b16 %v693, %v689
        %v894 = vpack.c.b16 %v694, %v690
        %v895 = vpack.c.b16 %v695, %v691
        %v896 = vpack.c.b16 %v696, %v692
        %v897 = vpack.c.b16 %v701, %v697
        %v898 = vpack.c.b16 %v702, %v698
        %v899 = vpack.c.b16 %v703, %v699
        %v900 = vpack.c.b16 %v704, %v700
        %v901 = vpack.c.b16 %v709, %v705
        %v902 = vpack.c.b16 %v710, %v706
        %v903 = vpack.c.b16 %v711, %v707
        %v904 = vpack.c.b16 %v712, %v708
        %v905 = vpack.c.b16 %v717, %v713
        %v906 = vpack.c.b16 %v718, %v714
        %v907 = vpack.c.b16 %v719, %v715
        %v908 = vpack.c.b16 %v720, %v716
        %v909 = vpack.c.b16 %v725, %v721
        %v910 = vpack.c.b16 %v726, %v722
        %v911 = vpack.c.b16 %v727, %v723
        %v912 = vpack.c.b16 %v728, %v724
        %v913 = vpack.c.b16 %v733, %v729
        %v914 = vpack.c.b16 %v734, %v730
        %v915 = vpack.c.b16 %v735, %v731
        %v916 = vpack.c.b16 %v736, %v732
        %v917 = vpack.c.b16 %v741, %v737
        %v918 = vpack.c.b16 %v742, %v738
        %v919 = vpack.c.b16 %v743, %v739
        %v920 = vpack.c.b16 %v744, %v740
        %v921 = vpack.c.b16 %v749, %v745
        %v922 = vpack.c.b16 %v750, %v746
        %v923 = vpack.c.b16 %v751, %v747
        %v924 = vpack.c.b16 %v752, %v748
        %v925 = vpack.c.b16 %v757, %v753
        %v926 = vpack.c.b16 %v758, %v754
        %v927 = vpack.c.b16 %v759, %v755
        %v928 = vpack.c.b16 %v760, %v756
        %v929 = vpack.c.b16 %v765, %v761
        %v930 = vpack.c.b16 %v766, %v762
        %v931 = vpack.c.b16 %v767, %v763
        %v932 = vpack.c.b16 %v768, %v764
        %v933 = vpack.c.b16 %v773, %v769
        %v934 = vpack.c.b16 %v774, %v770
        %v935 = vpack.c.b16 %v775, %v771
        %v936 = vpack.c.b16 %v776, %v772
        %v937 = vpack.c.b16 %v781, %v777
        %v938 = vpack.c.b16 %v782, %v778
        %v939 = vpack.c.b16 %v783, %v779
        %v940 = vpack.c.b16 %v784, %v780
        %v941 = vpack.c.b16 %v789, %v785
        %v942 = vpack.c.b16 %v790, %v786
        %v943 = vpack.c.b16 %v791, %v787
        %v944 = vpack.c.b16 %v792, %v788
        %v945 = vpack.c.b16 %v797, %v793
        %v946 = vpack.c.b16 %v798, %v794
        %v947 = vpack.c.b16 %v799, %v795
        %v948 = vpack.c.b16 %v800, %v796
        %v949 = vpack.c.b16 %v805, %v801
        %v950 = vpack.c.b16 %v806, %v802
        %v951 = vpack.c.b16 %v807, %v803
        %v952 = vpack.c.b16 %v808, %v804
        %v953 = vpack.c.b16 %v813, %v809
        %v954 = vpack.c.b16 %v814, %v810
        %v955 = vpack.c.b16 %v815, %v811
        %v956 = vpack.c.b16 %v816, %v812
        %v957 = vpack.c.b16 %v821, %v817
        %v958 = vpack.c.b16 %v822, %v818
        %v959 = vpack.c.b16 %v823, %v819
        %v960 = vpack.c.b16 %v824, %v820
        %v961 = vpack.c.b16 %v829, %v825
        %v962 = vpack.c.b16 %v830, %v826
        %v963 = vpack.c.b16 %v831, %v827
        %v964 = vpack.c.b16 %v832, %v828
        %v965 = vpack.c.b16 %v837, %v833
        %v966 = vpack.c.b16 %v838, %v834
        %v967 = vpack.c.b16 %v839, %v835
        %v968 = vpack.c.b16 %v840, %v836
        %1097 = vmatprep.subr.bf16.mxu0 %v842
        %1098 = vmatpush1.bf16.msra.mxu0 %v841
        %1099 = vmatprep.subr.bf16.mxu0 %v846
        %1100 = vmatpush1.bf16.msra.mxu0 %v845
        %1101 = vmatprep.subr.bf16.mxu0 %v850
        %1102 = vmatpush1.bf16.msra.mxu0 %v849
        %1103 = vmatprep.subr.bf16.mxu0 %v854
        %1104 = vmatpush1.bf16.msra.mxu0 %v853
        %1105 = vmatprep.subr.bf16.mxu0 %v858
        %1106 = vmatpush1.bf16.msra.mxu0 %v857
        %1107 = vmatprep.subr.bf16.mxu0 %v862
        %1108 = vmatpush1.bf16.msra.mxu0 %v861
        %1109 = vmatprep.subr.bf16.mxu0 %v866
        %1110 = vmatpush1.bf16.msra.mxu0 %v865
        %1111 = vmatprep.subr.bf16.mxu0 %v870
        %1112 = vmatpush1.bf16.msra.mxu0 %v869
        %1113 = vmatprep.subr.bf16.mxu0 %v874
        %1114 = vmatpush1.bf16.msra.mxu0 %v873
        %1115 = vmatprep.subr.bf16.mxu0 %v878
        %1116 = vmatpush1.bf16.msra.mxu0 %v877
        %1117 = vmatprep.subr.bf16.mxu0 %v882
        %1118 = vmatpush1.bf16.msra.mxu0 %v881
        %1119 = vmatprep.subr.bf16.mxu0 %v886
        %1120 = vmatpush1.bf16.msra.mxu0 %v885
        %1121 = vmatprep.subr.bf16.mxu0 %v890
        %1122 = vmatpush1.bf16.msra.mxu0 %v889
        %1123 = vmatprep.subr.bf16.mxu0 %v894
        %1124 = vmatpush1.bf16.msra.mxu0 %v893
        %1125 = vmatprep.subr.bf16.mxu0 %v898
        %1126 = vmatpush1.bf16.msra.mxu0 %v897
        %1127 = vmatprep.subr.bf16.mxu0 %v902
        %1128 = vmatpush1.bf16.msra.mxu0 %v901
        %1129 = vmatprep.mubr.bf16.mxu0 %v450
        %1130 = vmatmul.mubr.bf16.gmra.mrb[0].mxu0 %v449
        %v1131 = vpop.f32.mrb[0].mxu0
        %v1132 = vadd.f32 0.0, %v1131
        %v1133 = vpop.f32.mrb[0].mxu0
        %v1134 = vadd.f32 0.0, %v1133
        %v1135 = vpop.f32.mrb[0].mxu0
        %v1136 = vadd.f32 0.0, %v1135
        %v1137 = vpop.f32.mrb[0].mxu0
        %v1138 = vadd.f32 0.0, %v1137
        %1139 = vdwg.mxu0
        %1140 = vmatprep.subr.bf16.mxu0 %v906
        %1141 = vmatpush1.bf16.msra.mxu0 %v905
        %1142 = vmatprep.subr.bf16.mxu0 %v910
        %1143 = vmatpush1.bf16.msra.mxu0 %v909
        %1144 = vmatprep.subr.bf16.mxu0 %v914
        %1145 = vmatpush1.bf16.msra.mxu0 %v913
        %1146 = vmatprep.subr.bf16.mxu0 %v918
        %1147 = vmatpush1.bf16.msra.mxu0 %v917
        %1148 = vmatprep.subr.bf16.mxu0 %v922
        %1149 = vmatpush1.bf16.msra.mxu0 %v921
        %1150 = vmatprep.subr.bf16.mxu0 %v926
        %1151 = vmatpush1.bf16.msra.mxu0 %v925
        %1152 = vmatprep.subr.bf16.mxu0 %v930
        %1153 = vmatpush1.bf16.msra.mxu0 %v929
        %1154 = vmatprep.subr.bf16.mxu0 %v934
        %1155 = vmatpush1.bf16.msra.mxu0 %v933
        %1156 = vmatprep.subr.bf16.mxu0 %v938
        %1157 = vmatpush1.bf16.msra.mxu0 %v937
        %1158 = vmatprep.subr.bf16.mxu0 %v942
        %1159 = vmatpush1.bf16.msra.mxu0 %v941
        %1160 = vmatprep.subr.bf16.mxu0 %v946
        %1161 = vmatpush1.bf16.msra.mxu0 %v945
        %1162 = vmatprep.subr.bf16.mxu0 %v950
        %1163 = vmatpush1.bf16.msra.mxu0 %v949
        %1164 = vmatprep.subr.bf16.mxu0 %v954
        %1165 = vmatpush1.bf16.msra.mxu0 %v953
        %1166 = vmatprep.subr.bf16.mxu0 %v958
        %1167 = vmatpush1.bf16.msra.mxu0 %v957
        %1168 = vmatprep.subr.bf16.mxu0 %v962
        %1169 = vmatpush1.bf16.msra.mxu0 %v961
        %1170 = vmatprep.subr.bf16.mxu0 %v966
        %1171 = vmatpush1.bf16.msra.mxu0 %v965
        %1172 = vmatprep.mubr.bf16.mxu0 %v452
        %1173 = vmatmul.mubr.bf16.gmra.mrb[0].mxu0 %v451
        %v1174 = vpop.f32.mrb[0].mxu0
        %v1175 = vadd.f32 %v1132, %v1174
        %v1176 = vpop.f32.mrb[0].mxu0
        %v1177 = vadd.f32 %v1134, %v1176
        %v1178 = vpop.f32.mrb[0].mxu0
        %v1179 = vadd.f32 %v1136, %v1178
        %v1180 = vpop.f32.mrb[0].mxu0
        %v1181 = vadd.f32 %v1138, %v1180
        %1182 = vdwg.mxu0
        %1183 = vmatprep.subr.bf16.mxu0 %v844
        %1184 = vmatpush1.bf16.msra.mxu0 %v843
        %1185 = vmatprep.subr.bf16.mxu0 %v848
        %1186 = vmatpush1.bf16.msra.mxu0 %v847
        %1187 = vmatprep.subr.bf16.mxu0 %v852
        %1188 = vmatpush1.bf16.msra.mxu0 %v851
        %1189 = vmatprep.subr.bf16.mxu0 %v856
        %1190 = vmatpush1.bf16.msra.mxu0 %v855
        %1191 = vmatprep.subr.bf16.mxu0 %v860
        %1192 = vmatpush1.bf16.msra.mxu0 %v859
        %1193 = vmatprep.subr.bf16.mxu0 %v864
        %1194 = vmatpush1.bf16.msra.mxu0 %v863
        %1195 = vmatprep.subr.bf16.mxu0 %v868
        %1196 = vmatpush1.bf16.msra.mxu0 %v867
        %1197 = vmatprep.subr.bf16.mxu0 %v872
        %1198 = vmatpush1.bf16.msra.mxu0 %v871
        %1199 = vmatprep.subr.bf16.mxu0 %v876
        %1200 = vmatpush1.bf16.msra.mxu0 %v875
        %1201 = vmatprep.subr.bf16.mxu0 %v880
        %1202 = vmatpush1.bf16.msra.mxu0 %v879
        %1203 = vmatprep.subr.bf16.mxu0 %v884
        %1204 = vmatpush1.bf16.msra.mxu0 %v883
        %1205 = vmatprep.subr.bf16.mxu0 %v888
        %1206 = vmatpush1.bf16.msra.mxu0 %v887
        %1207 = vmatprep.subr.bf16.mxu0 %v892
        %1208 = vmatpush1.bf16.msra.mxu0 %v891
        %1209 = vmatprep.subr.bf16.mxu0 %v896
        %1210 = vmatpush1.bf16.msra.mxu0 %v895
        %1211 = vmatprep.subr.bf16.mxu0 %v900
        %1212 = vmatpush1.bf16.msra.mxu0 %v899
        %1213 = vmatprep.subr.bf16.mxu0 %v904
        %1214 = vmatpush1.bf16.msra.mxu0 %v903
        %1215 = vmatprep.mubr.bf16.mxu0 %v450
        %1216 = vmatmul.mubr.bf16.gmra.mrb[0].mxu0 %v449
        %v1217 = vpop.f32.mrb[0].mxu0
        %v1218 = vadd.f32 0.0, %v1217
        %v1219 = vpop.f32.mrb[0].mxu0
        %v1220 = vadd.f32 0.0, %v1219
        %v1221 = vpop.f32.mrb[0].mxu0
        %v1222 = vadd.f32 0.0, %v1221
        %v1223 = vpop.f32.mrb[0].mxu0
        %v1224 = vadd.f32 0.0, %v1223
        %1225 = vdwg.mxu0
        %1226 = vmatprep.subr.bf16.mxu0 %v908
        %1227 = vmatpush1.bf16.msra.mxu0 %v907
        %1228 = vmatprep.subr.bf16.mxu0 %v912
        %1229 = vmatpush1.bf16.msra.mxu0 %v911
        %1230 = vmatprep.subr.bf16.mxu0 %v916
        %1231 = vmatpush1.bf16.msra.mxu0 %v915
        %1232 = vmatprep.subr.bf16.mxu0 %v920
        %1233 = vmatpush1.bf16.msra.mxu0 %v919
        %1234 = vmatprep.subr.bf16.mxu0 %v924
        %1235 = vmatpush1.bf16.msra.mxu0 %v923
        %1236 = vmatprep.subr.bf16.mxu0 %v928
        %1237 = vmatpush1.bf16.msra.mxu0 %v927
        %1238 = vmatprep.subr.bf16.mxu0 %v932
        %1239 = vmatpush1.bf16.msra.mxu0 %v931
        %1240 = vmatprep.subr.bf16.mxu0 %v936
        %1241 = vmatpush1.bf16.msra.mxu0 %v935
        %1242 = vmatprep.subr.bf16.mxu0 %v940
        %1243 = vmatpush1.bf16.msra.mxu0 %v939
        %1244 = vmatprep.subr.bf16.mxu0 %v944
        %1245 = vmatpush1.bf16.msra.mxu0 %v943
        %1246 = vmatprep.subr.bf16.mxu0 %v948
        %1247 = vmatpush1.bf16.msra.mxu0 %v947
        %1248 = vmatprep.subr.bf16.mxu0 %v952
        %1249 = vmatpush1.bf16.msra.mxu0 %v951
        %1250 = vmatprep.subr.bf16.mxu0 %v956
        %1251 = vmatpush1.bf16.msra.mxu0 %v955
        %1252 = vmatprep.subr.bf16.mxu0 %v960
        %1253 = vmatpush1.bf16.msra.mxu0 %v959
        %1254 = vmatprep.subr.bf16.mxu0 %v964
        %1255 = vmatpush1.bf16.msra.mxu0 %v963
        %1256 = vmatprep.subr.bf16.mxu0 %v968
        %1257 = vmatpush1.bf16.msra.mxu0 %v967
        %1258 = vmatprep.mubr.bf16.mxu0 %v452
        %1259 = vmatmul.mubr.bf16.gmra.mrb[0].mxu0 %v451
        %v1260 = vpop.f32.mrb[0].mxu0
        %v1261 = vadd.f32 %v1218, %v1260
        %v1262 = vpop.f32.mrb[0].mxu0
        %v1263 = vadd.f32 %v1220, %v1262
        %v1264 = vpop.f32.mrb[0].mxu0
        %v1265 = vadd.f32 %v1222, %v1264
        %v1266 = vpop.f32.mrb[0].mxu0
        %v1267 = vadd.f32 %v1224, %v1266
        %1268 = vdwg.mxu0
        %v1269 = vadd.f32 %v297, %v1175
        %v1270 = vadd.f32 %v298, %v1177
        %v1271 = vadd.f32 %v299, %v1261
        %v1272 = vadd.f32 %v300, %v1263
        %v1273 = vadd.f32 %v301, %v1179
        %v1274 = vadd.f32 %v302, %v1181
        %v1275 = vadd.f32 %v303, %v1265
        %v1276 = vadd.f32 %v304, %v1267
        %1277 = vst [vmem:[#allocation2] sm:$0xff] %v1269
        %1278 = vst [vmem:[#allocation2 + $0x8] sm:$0xff] %v1270
        %1279 = vst [vmem:[#allocation2 + $0x10] sm:$0xff] %v1271
        %1280 = vst [vmem:[#allocation2 + $0x18] sm:$0xff] %v1272
        %1281 = vst [vmem:[#allocation2 + $0x20] sm:$0xff] %v1273
        %1282 = vst [vmem:[#allocation2 + $0x28] sm:$0xff] %v1274
        %1283 = vst [vmem:[#allocation2 + $0x30] sm:$0xff] %v1275
        %1284 = vst [vmem:[#allocation2 + $0x38] sm:$0xff] %v1276
        %p1285 = scmp.eq.s32.totalorder %s27, 1
        // Predicated region
        $region53: #{tpu_custom_call.1} parent=35 // pred_check
          %p1286 = pneg %p1285
        $region54: #{tpu_custom_call.1} parent=35 // pred_check_branch
          %1288 = sbr.rel (%p1286) target = $region56
        $region55: #{tpu_custom_call.1} parent=35 // pred_region
          %v1289 = vld [vmem:[#allocation2] sm:$0xff]
          %v1290 = vld [vmem:[#allocation2 + $0x8] sm:$0xff]
          %v1291 = vld [vmem:[#allocation2 + $0x10] sm:$0xff]
          %v1292 = vld [vmem:[#allocation2 + $0x18] sm:$0xff]
          %v1293 = vld [vmem:[#allocation2 + $0x20] sm:$0xff]
          %v1294 = vld [vmem:[#allocation2 + $0x28] sm:$0xff]
          %v1295 = vld [vmem:[#allocation2 + $0x30] sm:$0xff]
          %v1296 = vld [vmem:[#allocation2 + $0x38] sm:$0xff]
          %v1297 = vld [vmem:[#allocation8] sm:$0xff]
          %v1298 = vld [vmem:[#allocation8 + $0x8] sm:$0xff]
          %v1299 = vld [vmem:[#allocation8 + $0x10] sm:$0xff]
          %v1300 = vld [vmem:[#allocation8 + $0x18] sm:$0xff]
          %v1301 = vld [vmem:[#allocation8 + $0x20] sm:$0xff]
          %v1302 = vld [vmem:[#allocation8 + $0x28] sm:$0xff]
          %v1303 = vld [vmem:[#allocation8 + $0x30] sm:$0xff]
          %v1304 = vld [vmem:[#allocation8 + $0x38] sm:$0xff]
          %v1305 = vld [vmem:[#allocation8 + $0x40] sm:$0xff]
          %v1306 = vld [vmem:[#allocation8 + $0x48] sm:$0xff]
          %v1307 = vld [vmem:[#allocation8 + $0x50] sm:$0xff]
          %v1308 = vld [vmem:[#allocation8 + $0x58] sm:$0xff]
          %v1309 = vld [vmem:[#allocation8 + $0x60] sm:$0xff]
          %v1310 = vld [vmem:[#allocation8 + $0x68] sm:$0xff]
          %v1311 = vld [vmem:[#allocation8 + $0x70] sm:$0xff]
          %v1312 = vld [vmem:[#allocation8 + $0x78] sm:$0xff]
          %v1313 = vld [vmem:[#allocation8 + $0x80] sm:$0xff]
          %v1314 = vld [vmem:[#allocation8 + $0x88] sm:$0xff]
          %v1315 = vld [vmem:[#allocation8 + $0x90] sm:$0xff]
          %v1316 = vld [vmem:[#allocation8 + $0x98] sm:$0xff]
          %v1317 = vld [vmem:[#allocation8 + $0xa0] sm:$0xff]
          %v1318 = vld [vmem:[#allocation8 + $0xa8] sm:$0xff]
          %v1319 = vld [vmem:[#allocation8 + $0xb0] sm:$0xff]
          %v1320 = vld [vmem:[#allocation8 + $0xb8] sm:$0xff]
          %v1321 = vld [vmem:[#allocation8 + $0xc0] sm:$0xff]
          %v1322 = vld [vmem:[#allocation8 + $0xc8] sm:$0xff]
          %v1323 = vld [vmem:[#allocation8 + $0xd0] sm:$0xff]
          %v1324 = vld [vmem:[#allocation8 + $0xd8] sm:$0xff]
          %v1325 = vld [vmem:[#allocation8 + $0xe0] sm:$0xff]
          %v1326 = vld [vmem:[#allocation8 + $0xe8] sm:$0xff]
          %v1327 = vld [vmem:[#allocation8 + $0xf0] sm:$0xff]
          %v1328 = vld [vmem:[#allocation8 + $0xf8] sm:$0xff]
          %v1329 = vld [vmem:[#allocation8 + $0x100] sm:$0xff]
          %v1330 = vld [vmem:[#allocation8 + $0x108] sm:$0xff]
          %v1331 = vld [vmem:[#allocation8 + $0x110] sm:$0xff]
          %v1332 = vld [vmem:[#allocation8 + $0x118] sm:$0xff]
          %v1333 = vld [vmem:[#allocation8 + $0x120] sm:$0xff]
          %v1334 = vld [vmem:[#allocation8 + $0x128] sm:$0xff]
          %v1335 = vld [vmem:[#allocation8 + $0x130] sm:$0xff]
          %v1336 = vld [vmem:[#allocation8 + $0x138] sm:$0xff]
          %v1337 = vld [vmem:[#allocation8 + $0x140] sm:$0xff]
          %v1338 = vld [vmem:[#allocation8 + $0x148] sm:$0xff]
          %v1339 = vld [vmem:[#allocation8 + $0x150] sm:$0xff]
          %v1340 = vld [vmem:[#allocation8 + $0x158] sm:$0xff]
          %v1341 = vld [vmem:[#allocation8 + $0x160] sm:$0xff]
          %v1342 = vld [vmem:[#allocation8 + $0x168] sm:$0xff]
          %v1343 = vld [vmem:[#allocation8 + $0x170] sm:$0xff]
          %v1344 = vld [vmem:[#allocation8 + $0x178] sm:$0xff]
          %v1345 = vld [vmem:[#allocation8 + $0x180] sm:$0xff]
          %v1346 = vld [vmem:[#allocation8 + $0x188] sm:$0xff]
          %v1347 = vld [vmem:[#allocation8 + $0x190] sm:$0xff]
          %v1348 = vld [vmem:[#allocation8 + $0x198] sm:$0xff]
          %v1349 = vld [vmem:[#allocation8 + $0x1a0] sm:$0xff]
          %v1350 = vld [vmem:[#allocation8 + $0x1a8] sm:$0xff]
          %v1351 = vld [vmem:[#allocation8 + $0x1b0] sm:$0xff]
          %v1352 = vld [vmem:[#allocation8 + $0x1b8] sm:$0xff]
          %v1353 = vld [vmem:[#allocation8 + $0x1c0] sm:$0xff]
          %v1354 = vld [vmem:[#allocation8 + $0x1c8] sm:$0xff]
          %v1355 = vld [vmem:[#allocation8 + $0x1d0] sm:$0xff]
          %v1356 = vld [vmem:[#allocation8 + $0x1d8] sm:$0xff]
          %v1357 = vld [vmem:[#allocation8 + $0x1e0] sm:$0xff]
          %v1358 = vld [vmem:[#allocation8 + $0x1e8] sm:$0xff]
          %v1359 = vld [vmem:[#allocation8 + $0x1f0] sm:$0xff]
          %v1360 = vld [vmem:[#allocation8 + $0x1f8] sm:$0xff]
          %v1361 = vld [vmem:[%s3] sm:$0x1]
          %v1363 = vlaneseq
          %v1364 = vshrl.u32 %v1363, 7
          %v1365 = vsub.s32 0, %v1364
          %v1366 = vrot.slane %v1361, %v1365
          %1368 = vmatprep.subr.mxu0 0.0
          %1369 = vmatpush1.msra.mxu0 %v1297
          %1370 = vmatprep.subr.mxu0 0.0
          %1371 = vmatpush1.msra.mxu0 %v1298
          %1372 = vmatprep.subr.mxu0 0.0
          %1373 = vmatpush1.msra.mxu0 %v1299
          %1374 = vmatprep.subr.mxu0 0.0
          %1375 = vmatpush1.msra.mxu0 %v1300
          %1376 = vmatprep.subr.mxu0 0.0
          %1377 = vmatpush1.msra.mxu0 %v1301
          %1378 = vmatprep.subr.mxu0 0.0
          %1379 = vmatpush1.msra.mxu0 %v1302
          %1380 = vmatprep.subr.mxu0 0.0
          %1381 = vmatpush1.msra.mxu0 %v1303
          %1382 = vmatprep.subr.mxu0 0.0
          %1383 = vmatpush1.msra.mxu0 %v1304
          %1384 = vmatprep.subr.mxu0 0.0
          %1385 = vmatpush1.msra.mxu0 %v1305
          %1386 = vmatprep.subr.mxu0 0.0
          %1387 = vmatpush1.msra.mxu0 %v1306
          %1388 = vmatprep.subr.mxu0 0.0
          %1389 = vmatpush1.msra.mxu0 %v1307
          %1390 = vmatprep.subr.mxu0 0.0
          %1391 = vmatpush1.msra.mxu0 %v1308
          %1392 = vmatprep.subr.mxu0 0.0
          %1393 = vmatpush1.msra.mxu0 %v1309
          %1394 = vmatprep.subr.mxu0 0.0
          %1395 = vmatpush1.msra.mxu0 %v1310
          %1396 = vmatprep.subr.mxu0 0.0
          %1397 = vmatpush1.msra.mxu0 %v1311
          %1398 = vmatprep.subr.mxu0 0.0
          %1399 = vmatpush1.msra.mxu0 %v1312
          %1400 = vmatprep.subr.mxu0 0.0
          %1401 = vmatpush1.msra.mxu0 %v1313
          %1402 = vmatprep.subr.mxu0 0.0
          %1403 = vmatpush1.msra.mxu0 %v1314
          %1404 = vmatprep.subr.mxu0 0.0
          %1405 = vmatpush1.msra.mxu0 %v1315
          %1406 = vmatprep.subr.mxu0 0.0
          %1407 = vmatpush1.msra.mxu0 %v1316
          %1408 = vmatprep.subr.mxu0 0.0
          %1409 = vmatpush1.msra.mxu0 %v1317
          %1410 = vmatprep.subr.mxu0 0.0
          %1411 = vmatpush1.msra.mxu0 %v1318
          %1412 = vmatprep.subr.mxu0 0.0
          %1413 = vmatpush1.msra.mxu0 %v1319
          %1414 = vmatprep.subr.mxu0 0.0
          %1415 = vmatpush1.msra.mxu0 %v1320
          %1416 = vmatprep.subr.mxu0 0.0
          %1417 = vmatpush1.msra.mxu0 %v1321
          %1418 = vmatprep.subr.mxu0 0.0
          %1419 = vmatpush1.msra.mxu0 %v1322
          %1420 = vmatprep.subr.mxu0 0.0
          %1421 = vmatpush1.msra.mxu0 %v1323
          %1422 = vmatprep.subr.mxu0 0.0
          %1423 = vmatpush1.msra.mxu0 %v1324
          %1424 = vmatprep.subr.mxu0 0.0
          %1425 = vmatpush1.msra.mxu0 %v1325
          %1426 = vmatprep.subr.mxu0 0.0
          %1427 = vmatpush1.msra.mxu0 %v1326
          %1428 = vmatprep.subr.mxu0 0.0
          %1429 = vmatpush1.msra.mxu0 %v1327
          %1430 = vmatprep.subr.mxu0 0.0
          %1431 = vmatpush1.msra.mxu0 %v1328
          %1432 = vmatprep.mubr.f32.mxu0 %v1290
          %1433 = vmatmul.mubr.f32.gmra.mrb[0].mxu0 %v1289
          %v1434 = vpop.f32.mrb[0].mxu0
          %v1435 = vadd.f32 %v1366, %v1434
          %v1436 = vpop.f32.mrb[0].mxu0
          %1437 = vmatprep.mubr.f32.mxu0 %v1294
          %1438 = vmatmul.mubr.f32.gmra.mrb[0].mxu0 %v1293
          %v1439 = vpop.f32.mrb[0].mxu0
          %v1440 = vadd.f32 %v1366, %v1439
          %v1441 = vpop.f32.mrb[0].mxu0
          %1442 = vdwg.mxu0
          %1443 = vmatprep.subr.mxu0 0.0
          %1444 = vmatpush1.msra.mxu0 %v1329
          %1445 = vmatprep.subr.mxu0 0.0
          %1446 = vmatpush1.msra.mxu0 %v1330
          %1447 = vmatprep.subr.mxu0 0.0
          %1448 = vmatpush1.msra.mxu0 %v1331
          %1449 = vmatprep.subr.mxu0 0.0
          %1450 = vmatpush1.msra.mxu0 %v1332
          %1451 = vmatprep.subr.mxu0 0.0
          %1452 = vmatpush1.msra.mxu0 %v1333
          %1453 = vmatprep.subr.mxu0 0.0
          %1454 = vmatpush1.msra.mxu0 %v1334
          %1455 = vmatprep.subr.mxu0 0.0
          %1456 = vmatpush1.msra.mxu0 %v1335
          %1457 = vmatprep.subr.mxu0 0.0
          %1458 = vmatpush1.msra.mxu0 %v1336
          %1459 = vmatprep.subr.mxu0 0.0
          %1460 = vmatpush1.msra.mxu0 %v1337
          %1461 = vmatprep.subr.mxu0 0.0
          %1462 = vmatpush1.msra.mxu0 %v1338
          %1463 = vmatprep.subr.mxu0 0.0
          %1464 = vmatpush1.msra.mxu0 %v1339
          %1465 = vmatprep.subr.mxu0 0.0
          %1466 = vmatpush1.msra.mxu0 %v1340
          %1467 = vmatprep.subr.mxu0 0.0
          %1468 = vmatpush1.msra.mxu0 %v1341
          %1469 = vmatprep.subr.mxu0 0.0
          %1470 = vmatpush1.msra.mxu0 %v1342
          %1471 = vmatprep.subr.mxu0 0.0
          %1472 = vmatpush1.msra.mxu0 %v1343
          %1473 = vmatprep.subr.mxu0 0.0
          %1474 = vmatpush1.msra.mxu0 %v1344
          %1475 = vmatprep.subr.mxu0 0.0
          %1476 = vmatpush1.msra.mxu0 %v1345
          %1477 = vmatprep.subr.mxu0 0.0
          %1478 = vmatpush1.msra.mxu0 %v1346
          %1479 = vmatprep.subr.mxu0 0.0
          %1480 = vmatpush1.msra.mxu0 %v1347
          %1481 = vmatprep.subr.mxu0 0.0
          %1482 = vmatpush1.msra.mxu0 %v1348
          %1483 = vmatprep.subr.mxu0 0.0
          %1484 = vmatpush1.msra.mxu0 %v1349
          %1485 = vmatprep.subr.mxu0 0.0
          %1486 = vmatpush1.msra.mxu0 %v1350
          %1487 = vmatprep.subr.mxu0 0.0
          %1488 = vmatpush1.msra.mxu0 %v1351
          %1489 = vmatprep.subr.mxu0 0.0
          %1490 = vmatpush1.msra.mxu0 %v1352
          %1491 = vmatprep.subr.mxu0 0.0
          %1492 = vmatpush1.msra.mxu0 %v1353
          %1493 = vmatprep.subr.mxu0 0.0
          %1494 = vmatpush1.msra.mxu0 %v1354
          %1495 = vmatprep.subr.mxu0 0.0
          %1496 = vmatpush1.msra.mxu0 %v1355
          %1497 = vmatprep.subr.mxu0 0.0
          %1498 = vmatpush1.msra.mxu0 %v1356
          %1499 = vmatprep.subr.mxu0 0.0
          %1500 = vmatpush1.msra.mxu0 %v1357
          %1501 = vmatprep.subr.mxu0 0.0
          %1502 = vmatpush1.msra.mxu0 %v1358
          %1503 = vmatprep.subr.mxu0 0.0
          %1504 = vmatpush1.msra.mxu0 %v1359
          %1505 = vmatprep.subr.mxu0 0.0
          %1506 = vmatpush1.msra.mxu0 %v1360
          %1507 = vmatprep.mubr.f32.mxu0 %v1292
          %1508 = vmatmul.mubr.f32.gmra.mrb[0].mxu0 %v1291
          %v1509 = vpop.f32.mrb[0].mxu0
          %v1510 = vadd.f32 %v1435, %v1509
          %v1511 = vpop.f32.mrb[0].mxu0
          %1512 = vmatprep.mubr.f32.mxu0 %v1296
          %1513 = vmatmul.mubr.f32.gmra.mrb[0].mxu0 %v1295
          %v1514 = vpop.f32.mrb[0].mxu0
          %v1515 = vadd.f32 %v1440, %v1514
          %v1516 = vpop.f32.mrb[0].mxu0
          %1517 = vdwg.mxu0
          %1518 = vst [vmem:[#allocation9] sm:$0xff] %v1510
          %1519 = vst [vmem:[#allocation9 + $0x8] sm:$0xff] %v1515
        $region56: #{tpu_custom_call.1} parent=35 // pred_fallthru
          _
        // Predicated region
        $region57: #{tpu_custom_call.1} parent=35 // pred_check
          %p1520 = pneg %p148
        $region58: #{tpu_custom_call.1} parent=35 // pred_check_branch
          %1522 = sbr.rel (%p1520) target = $region60
        $region59: #{tpu_custom_call.1} parent=35 // pred_region
          %s1523 = smul.u32 2, %s26
          %s1525 = ssub.s32 256, 256
          %1526 = vsyncadd [#allocation5], %s1525
          %s1527 = smul.addr %s1523, 128
          %s1528 = scalar_lea.hbm %s4, %s1527
          %s1529 = sshll.u32 [#allocation9], 4
          %s1530 = int_to_ptr.vmem [resolvable:$true] %s1529
          %1535 = dma.vmem_to_hbm [thread:$0]  %s1530, 256, %s1528, [#allocation5], 128, 128, 8
        $region60: #{tpu_custom_call.1} parent=35 // pred_fallthru
          _
        // Predicated region
        $region61: #{tpu_custom_call.1} parent=35 // pred_check
          %p1536 = pneg %p148
        $region62: #{tpu_custom_call.1} parent=35 // pred_check_branch
          %1538 = sbr.rel (%p1536) target = $region64
        $region63: #{tpu_custom_call.1} parent=35 // pred_region
          %1539 = dma.done [#allocation5], 256
        $region64: #{tpu_custom_call.1} parent=35 // pred_fallthru
          _
      $region36: #{tpu_custom_call.1} parent=5 // pred_fallthru
        _
      %p1540 = scmp.le.s32.totalorder 2, %s17
      // Predicated region
      $region65: #{tpu_custom_call.1} parent=5 // pred_check
        %p1541 = pneg %p1540
      $region66: #{tpu_custom_call.1} parent=5 // pred_check_branch
        %1543 = sbr.rel (%p1541) target = $region68
      $region67: #{tpu_custom_call.1} parent=5 // pred_region
        %s1544 = ssub.s32 %s17, 2
      $region68: #{tpu_custom_call.1} parent=5 // pred_fallthru
        _
    $region6: #{tpu_custom_call.1} parent=1 // loop_footer
      %s21 = sadd.s32 1, %s17
    $region7: #{tpu_custom_call.1} parent=1 // loop_footer_branch
      %16 = sbr.rel target = $region3
    $region8: #{tpu_custom_call.1} parent=1 // loop_exit
      _
    %1545 = vsyncpa [#allocation4], 1
    %s1546 = scalar_lea.sflag [#allocation4], 1
    %1547 = vsyncpa %s1546, 1
    %1548 = vsyncpa [#allocation7], 1
    %s1549 = scalar_lea.sflag [#allocation7], 1
    %1550 = vsyncpa %s1549, 1
    %1551 = vsyncpa [#allocation5], 1
    %s1552 = scalar_lea.sflag [#allocation5], 1
    %1553 = vsyncpa %s1552, 1

</llo_original>
